<compile_context>
chip_gen: v5e
topology: v5e:2x2
jax: 0.10.0
libtpu: 0.0.40
codegen_flags: <defaults>
</compile_context>

<pallas_src>
import functools

import jax
import jax.numpy as jnp
from jax import lax
from jax.experimental import pallas as pl
from jax.experimental.pallas import tpu as pltpu

D_IN, H1, H2, D_OUT = 4, 4, 3, 3

# Packed-parameter layout (weights row-major (out_features, in_features), like torch).
_W1_OFF = 0
_B1_OFF = _W1_OFF + H1 * D_IN          # 16
_W2_OFF = _B1_OFF + H1                 # 20
_B2_OFF = _W2_OFF + H2 * H1            # 32
_W3_OFF = _B2_OFF + H2                 # 35
_B3_OFF = _W3_OFF + D_OUT * H2         # 44
N_PARAMS = _B3_OFF + D_OUT             # 47

_MAX_CHUNK = 32  # sublane rows chained through the whole MLP per inner-loop step


def deathstar_kernel(p_ref, x_ref, o_ref, *, chunk):
    """p_ref: (47,) f32 in SMEM; x_ref: (4, TR, 128) f32; o_ref: (3, TR, 128) f32."""
    # Read every parameter once (scalar SMEM loads), outside the inner loop, so
    # no re-broadcasts happen per chunk.
    w1 = [[p_ref[_W1_OFF + j * D_IN + k] for k in range(D_IN)] for j in range(H1)]
    b1 = [p_ref[_B1_OFF + j] for j in range(H1)]
    w2 = [[p_ref[_W2_OFF + j * H1 + k] for k in range(H1)] for j in range(H2)]
    b2 = [p_ref[_B2_OFF + j] for j in range(H2)]
    w3 = [[p_ref[_W3_OFF + j * H2 + k] for k in range(H2)] for j in range(D_OUT)]
    b3 = [p_ref[_B3_OFF + j] for j in range(D_OUT)]

    n_chunks = x_ref.shape[1] // chunk  # static

    def body(c, carry):
        r0 = pl.multiple_of(c * chunk, chunk)
        # Four dense (chunk, 128) feature planes: batch on sublanes AND lanes.
        xs = [x_ref[k, pl.ds(r0, chunk), :] for k in range(D_IN)]

        # fc1 + ReLU: unrolled VPU FMAs with scalar weights.
        h1 = []
        for j in range(H1):
            acc = xs[0] * w1[j][0]
            for k in range(1, D_IN):
                acc = acc + xs[k] * w1[j][k]
            h1.append(jnp.maximum(acc + b1[j], 0.0))

        # fc2 + ReLU
        h2 = []
        for j in range(H2):
            acc = h1[0] * w2[j][0]
            for k in range(1, H1):
                acc = acc + h1[k] * w2[j][k]
            h2.append(jnp.maximum(acc + b2[j], 0.0))

        # fc3 (no activation): direct dense stores, one plane at a time.
        for j in range(D_OUT):
            acc = h2[0] * w3[j][0]
            for k in range(1, H2):
                acc = acc + h2[k] * w3[j][k]
            o_ref[j, pl.ds(r0, chunk), :] = acc + b3[j]
        return carry

    lax.fori_loop(0, n_chunks, body, 0, unroll=True)


def _round_up(n, m):
    return ((n + m - 1) // m) * m


def _cdiv(a, b):
    return (a + b - 1) // b


def _plan_tiles(batch, tr_max):
    """Even-split tile plan over rows of 128 lanes.  Returns (n_tiles, tr, chunk)."""
    assert tr_max >= 8 and tr_max % 8 == 0, "tr_max must be a multiple of 8"
    rows = max(_cdiv(batch, 128), 1)
    n_tiles = _cdiv(rows, tr_max)
    if n_tiles < 2 and rows >= 16:
        n_tiles = 2  # keep >=2 grid steps so v7x megacore can shard the grid
    tr = _round_up(_cdiv(rows, n_tiles), 8)
    chunk = min(_MAX_CHUNK, tr)
    tr = _round_up(tr, chunk)
    return n_tiles, tr, chunk


def _run(x_planes, packed_params, n_tiles, tr, chunk):
    rp = x_planes.shape[1]
    assert rp == n_tiles * tr
    return pl.pallas_call(
        functools.partial(deathstar_kernel, chunk=chunk),
        out_shape=jax.ShapeDtypeStruct((D_OUT, rp, 128), jnp.float32),
        grid=(n_tiles,),
        in_specs=[
            # All 47 parameters live in SMEM as 32-bit scalars (no per-step DMA).
            pl.BlockSpec(memory_space=pltpu.MemorySpace.SMEM),
            # Streaming, double-buffered, sublane+lane dense batch tile.
            pl.BlockSpec((D_IN, tr, 128), lambda i: (0, i, 0)),
        ],
        out_specs=pl.BlockSpec((D_OUT, tr, 128), lambda i: (0, i, 0)),
        compiler_params=pltpu.CompilerParams(
            dimension_semantics=("parallel",)),
    )(packed_params, x_planes)


@functools.partial(jax.jit, static_argnames=("tr_max",))
def deathstar_forward_planes(x_planes, packed_params, *, tr_max=512):
    """Fast path: x_planes is (4, R, 128) f32 with the batch laid out sublane+lane
    dense (batch index = row*128 + lane); returns (3, R, 128).  R must be a
    multiple of 8.  No extra HBM re-layout passes."""
    d, rows, lanes = x_planes.shape
    assert d == D_IN and lanes == 128 and rows % 8 == 0
    n_tiles, tr, chunk = _plan_tiles(rows * 128, tr_max)
    rp = n_tiles * tr
    xp = x_planes
    if rp != rows:
        xp = jnp.zeros((D_IN, rp, 128), jnp.float32).at[:, :rows].set(x_planes)
    out = _run(xp, packed_params, n_tiles, tr, chunk)
    return out[:, :rows] if rp != rows else out


@functools.partial(jax.jit, static_argnames=("tr_max",))
def deathstar_forward(x, packed_params, *, tr_max=512):
    """Compat path with the torch (B, 4) -> (B, 3) contract.

    NOTE: the (B,4) <-> planes re-layout below is an extra XLA pass over HBM;
    for throughput keep data in the (4, R, 128) planes layout end-to-end and use
    deathstar_forward_planes instead.
    """
    B = x.shape[0]
    n_tiles, tr, chunk = _plan_tiles(B, tr_max)
    rp = n_tiles * tr
    bp = rp * 128
    xp = jnp.zeros((bp, D_IN), jnp.float32).at[:B].set(x.astype(jnp.float32))
    xt = xp.T.reshape(D_IN, rp, 128)
    out = _run(xt, packed_params, n_tiles, tr, chunk)
    # Padded rows carry bias/ReLU garbage; the slice below discards them.
    return out.reshape(D_OUT, bp).T[:B]


def init_params(key):
    """Match torch.nn.Linear default init: U(-1/sqrt(fan_in), +1/sqrt(fan_in))."""
    def linear(k, fan_in, fan_out):
        kw, kb = jax.random.split(k)
        bound = 1.0 / (fan_in ** 0.5)
        w = jax.random.uniform(kw, (fan_out, fan_in), jnp.float32, -bound, bound)
        b = jax.random.uniform(kb, (fan_out,), jnp.float32, -bound, bound)
        return w, b

    k1, k2, k3 = jax.random.split(key, 3)
    w1, b1 = linear(k1, D_IN, H1)
    w2, b2 = linear(k2, H1, H2)
    w3, b3 = linear(k3, H2, D_OUT)
    return (w1, b1, w2, b2, w3, b3)


def pack_params(w1, b1, w2, b2, w3, b3):
    return jnp.concatenate([
        w1.reshape(-1), b1.reshape(-1),
        w2.reshape(-1), b2.reshape(-1),
        w3.reshape(-1), b3.reshape(-1),
    ]).astype(jnp.float32)


def reference_forward(x, params):
    w1, b1, w2, b2, w3, b3 = params
    h = jnp.maximum(x @ w1.T + b1, 0.0)
    h = jnp.maximum(h @ w2.T + b2, 0.0)
    return h @ w3.T + b3


if __name__ == "__main__":
    key = jax.random.PRNGKey(0)
    kx1, kx2, kx3, kp = jax.random.split(key, 4)

    params = init_params(kp)
    packed = pack_params(*params)
    assert packed.shape == (N_PARAMS,), packed.shape

    # 1) Small batch, single grid step (torch-style (B,4)->(B,3) contract).
    x1 = jax.random.normal(kx1, (8, D_IN), dtype=jnp.float32)
    out1 = jax.block_until_ready(deathstar_forward(x1, packed))
    ref1 = reference_forward(x1, params)
    assert out1.shape == (8, D_OUT), out1.shape
    assert jnp.allclose(out1, ref1, atol=1e-5, rtol=1e-5), "mismatch (small batch)"

    # 2) Non-multiple-of-128 batch: exercises padding + slice-back.
    x2 = jax.random.normal(kx2, (1000, D_IN), dtype=jnp.float32)
    out2 = jax.block_until_ready(deathstar_forward(x2, packed))
    ref2 = reference_forward(x2, params)
    assert out2.shape == (1000, D_OUT), out2.shape
    assert jnp.allclose(out2, ref2, atol=1e-5, rtol=1e-5), "mismatch (padded batch)"

    # 3) Multi-tile pipelined grid via the planes fast path (no wrapper transpose).
    x3 = jax.random.normal(kx3, (4096, D_IN), dtype=jnp.float32)
    x3_planes = x3.T.reshape(D_IN, 4096 // 128, 128)
    out3_planes = jax.block_until_ready(
        deathstar_forward_planes(x3_planes, packed, tr_max=8))
    out3 = out3_planes.reshape(D_OUT, 4096).T
    ref3 = reference_forward(x3, params)
    assert out3.shape == (4096, D_OUT), out3.shape
    assert jnp.allclose(out3, ref3, atol=1e-5, rtol=1e-5), "mismatch (multi-tile)"

    print("KERNEL_OK")
</pallas_src>

<mosaic_0001>
module attributes {stable_mosaic.version = 11 : i64} {
  func.func @deathstar_kernel(%arg0: i32, %arg1: memref<47xf32, #tpu.memory_space<smem>>, %arg2: memref<4x8x128xf32, #tpu.memory_space<vmem>>, %arg3: memref<3x8x128xf32, #tpu.memory_space<vmem>>) attributes {dimension_semantics = [#tpu.dimension_semantics<parallel>], iteration_bounds = array<i64: 1>, scalar_prefetch = 0 : i64, scratch_operands = 0 : i64, tpu.core_type = #tpu.core_type<tc>, window_params = [{transform_indices = @transform_0, window_bounds = array<i64: 47>}, {transform_indices = @transform_1, window_bounds = array<i64: 4, 8, 128>}, {transform_indices = @transform_2, window_bounds = array<i64: 3, 8, 128>}]} {
    %c0 = arith.constant 0 : index
    %0 = memref.load %arg1[%c0] : memref<47xf32, #tpu.memory_space<smem>>
    %c1 = arith.constant 1 : index
    %1 = memref.load %arg1[%c1] : memref<47xf32, #tpu.memory_space<smem>>
    %c2 = arith.constant 2 : index
    %2 = memref.load %arg1[%c2] : memref<47xf32, #tpu.memory_space<smem>>
    %c3 = arith.constant 3 : index
    %3 = memref.load %arg1[%c3] : memref<47xf32, #tpu.memory_space<smem>>
    %c4 = arith.constant 4 : index
    %4 = memref.load %arg1[%c4] : memref<47xf32, #tpu.memory_space<smem>>
    %c5 = arith.constant 5 : index
    %5 = memref.load %arg1[%c5] : memref<47xf32, #tpu.memory_space<smem>>
    %c6 = arith.constant 6 : index
    %6 = memref.load %arg1[%c6] : memref<47xf32, #tpu.memory_space<smem>>
    %c7 = arith.constant 7 : index
    %7 = memref.load %arg1[%c7] : memref<47xf32, #tpu.memory_space<smem>>
    %c8 = arith.constant 8 : index
    %8 = memref.load %arg1[%c8] : memref<47xf32, #tpu.memory_space<smem>>
    %c9 = arith.constant 9 : index
    %9 = memref.load %arg1[%c9] : memref<47xf32, #tpu.memory_space<smem>>
    %c10 = arith.constant 10 : index
    %10 = memref.load %arg1[%c10] : memref<47xf32, #tpu.memory_space<smem>>
    %c11 = arith.constant 11 : index
    %11 = memref.load %arg1[%c11] : memref<47xf32, #tpu.memory_space<smem>>
    %c12 = arith.constant 12 : index
    %12 = memref.load %arg1[%c12] : memref<47xf32, #tpu.memory_space<smem>>
    %c13 = arith.constant 13 : index
    %13 = memref.load %arg1[%c13] : memref<47xf32, #tpu.memory_space<smem>>
    %c14 = arith.constant 14 : index
    %14 = memref.load %arg1[%c14] : memref<47xf32, #tpu.memory_space<smem>>
    %c15 = arith.constant 15 : index
    %15 = memref.load %arg1[%c15] : memref<47xf32, #tpu.memory_space<smem>>
    %c16 = arith.constant 16 : index
    %16 = memref.load %arg1[%c16] : memref<47xf32, #tpu.memory_space<smem>>
    %c17 = arith.constant 17 : index
    %17 = memref.load %arg1[%c17] : memref<47xf32, #tpu.memory_space<smem>>
    %c18 = arith.constant 18 : index
    %18 = memref.load %arg1[%c18] : memref<47xf32, #tpu.memory_space<smem>>
    %c19 = arith.constant 19 : index
    %19 = memref.load %arg1[%c19] : memref<47xf32, #tpu.memory_space<smem>>
    %c20 = arith.constant 20 : index
    %20 = memref.load %arg1[%c20] : memref<47xf32, #tpu.memory_space<smem>>
    %c21 = arith.constant 21 : index
    %21 = memref.load %arg1[%c21] : memref<47xf32, #tpu.memory_space<smem>>
    %c22 = arith.constant 22 : index
    %22 = memref.load %arg1[%c22] : memref<47xf32, #tpu.memory_space<smem>>
    %c23 = arith.constant 23 : index
    %23 = memref.load %arg1[%c23] : memref<47xf32, #tpu.memory_space<smem>>
    %c24 = arith.constant 24 : index
    %24 = memref.load %arg1[%c24] : memref<47xf32, #tpu.memory_space<smem>>
    %c25 = arith.constant 25 : index
    %25 = memref.load %arg1[%c25] : memref<47xf32, #tpu.memory_space<smem>>
    %c26 = arith.constant 26 : index
    %26 = memref.load %arg1[%c26] : memref<47xf32, #tpu.memory_space<smem>>
    %c27 = arith.constant 27 : index
    %27 = memref.load %arg1[%c27] : memref<47xf32, #tpu.memory_space<smem>>
    %c28 = arith.constant 28 : index
    %28 = memref.load %arg1[%c28] : memref<47xf32, #tpu.memory_space<smem>>
    %c29 = arith.constant 29 : index
    %29 = memref.load %arg1[%c29] : memref<47xf32, #tpu.memory_space<smem>>
    %c30 = arith.constant 30 : index
    %30 = memref.load %arg1[%c30] : memref<47xf32, #tpu.memory_space<smem>>
    %c31 = arith.constant 31 : index
    %31 = memref.load %arg1[%c31] : memref<47xf32, #tpu.memory_space<smem>>
    %c32 = arith.constant 32 : index
    %32 = memref.load %arg1[%c32] : memref<47xf32, #tpu.memory_space<smem>>
    %c33 = arith.constant 33 : index
    %33 = memref.load %arg1[%c33] : memref<47xf32, #tpu.memory_space<smem>>
    %c34 = arith.constant 34 : index
    %34 = memref.load %arg1[%c34] : memref<47xf32, #tpu.memory_space<smem>>
    %c35 = arith.constant 35 : index
    %35 = memref.load %arg1[%c35] : memref<47xf32, #tpu.memory_space<smem>>
    %c36 = arith.constant 36 : index
    %36 = memref.load %arg1[%c36] : memref<47xf32, #tpu.memory_space<smem>>
    %c37 = arith.constant 37 : index
    %37 = memref.load %arg1[%c37] : memref<47xf32, #tpu.memory_space<smem>>
    %c38 = arith.constant 38 : index
    %38 = memref.load %arg1[%c38] : memref<47xf32, #tpu.memory_space<smem>>
    %c39 = arith.constant 39 : index
    %39 = memref.load %arg1[%c39] : memref<47xf32, #tpu.memory_space<smem>>
    %c40 = arith.constant 40 : index
    %40 = memref.load %arg1[%c40] : memref<47xf32, #tpu.memory_space<smem>>
    %c41 = arith.constant 41 : index
    %41 = memref.load %arg1[%c41] : memref<47xf32, #tpu.memory_space<smem>>
    %c42 = arith.constant 42 : index
    %42 = memref.load %arg1[%c42] : memref<47xf32, #tpu.memory_space<smem>>
    %c43 = arith.constant 43 : index
    %43 = memref.load %arg1[%c43] : memref<47xf32, #tpu.memory_space<smem>>
    %c44 = arith.constant 44 : index
    %44 = memref.load %arg1[%c44] : memref<47xf32, #tpu.memory_space<smem>>
    %c45 = arith.constant 45 : index
    %45 = memref.load %arg1[%c45] : memref<47xf32, #tpu.memory_space<smem>>
    %c46 = arith.constant 46 : index
    %46 = memref.load %arg1[%c46] : memref<47xf32, #tpu.memory_space<smem>>
    %c0_i32 = arith.constant 0 : i32
    %c8_i32 = arith.constant 8 : i32
    %47 = arith.muli %c0_i32, %c8_i32 : i32
    %48 = tpu.assume_multiple %47, 8 : i32
    %c0_0 = arith.constant 0 : index
    %49 = arith.index_cast %48 : i32 to index
    %c0_1 = arith.constant 0 : index
    %50 = vector.load %arg2[%c0_0, %49, %c0_1] : memref<4x8x128xf32, #tpu.memory_space<vmem>>, vector<1x8x128xf32>
    %51 = vector.shape_cast %50 : vector<1x8x128xf32> to vector<8x128xf32>
    %c1_2 = arith.constant 1 : index
    %52 = arith.index_cast %48 : i32 to index
    %c0_3 = arith.constant 0 : index
    %53 = vector.load %arg2[%c1_2, %52, %c0_3] : memref<4x8x128xf32, #tpu.memory_space<vmem>>, vector<1x8x128xf32>
    %54 = vector.shape_cast %53 : vector<1x8x128xf32> to vector<8x128xf32>
    %c2_4 = arith.constant 2 : index
    %55 = arith.index_cast %48 : i32 to index
    %c0_5 = arith.constant 0 : index
    %56 = vector.load %arg2[%c2_4, %55, %c0_5] : memref<4x8x128xf32, #tpu.memory_space<vmem>>, vector<1x8x128xf32>
    %57 = vector.shape_cast %56 : vector<1x8x128xf32> to vector<8x128xf32>
    %c3_6 = arith.constant 3 : index
    %58 = arith.index_cast %48 : i32 to index
    %c0_7 = arith.constant 0 : index
    %59 = vector.load %arg2[%c3_6, %58, %c0_7] : memref<4x8x128xf32, #tpu.memory_space<vmem>>, vector<1x8x128xf32>
    %60 = vector.shape_cast %59 : vector<1x8x128xf32> to vector<8x128xf32>
    %61 = vector.broadcast %0 : f32 to vector<8x128xf32>
    %62 = arith.mulf %51, %61 : vector<8x128xf32>
    %63 = vector.broadcast %1 : f32 to vector<8x128xf32>
    %64 = arith.mulf %54, %63 : vector<8x128xf32>
    %65 = arith.addf %62, %64 : vector<8x128xf32>
    %66 = vector.broadcast %2 : f32 to vector<8x128xf32>
    %67 = arith.mulf %57, %66 : vector<8x128xf32>
    %68 = arith.addf %65, %67 : vector<8x128xf32>
    %69 = vector.broadcast %3 : f32 to vector<8x128xf32>
    %70 = arith.mulf %60, %69 : vector<8x128xf32>
    %71 = arith.addf %68, %70 : vector<8x128xf32>
    %72 = vector.broadcast %16 : f32 to vector<8x128xf32>
    %73 = arith.addf %71, %72 : vector<8x128xf32>
    %cst = arith.constant 0.000000e+00 : f32
    %74 = vector.broadcast %cst : f32 to vector<8x128xf32>
    %75 = arith.maximumf %73, %74 : vector<8x128xf32>
    %76 = vector.broadcast %4 : f32 to vector<8x128xf32>
    %77 = arith.mulf %51, %76 : vector<8x128xf32>
    %78 = vector.broadcast %5 : f32 to vector<8x128xf32>
    %79 = arith.mulf %54, %78 : vector<8x128xf32>
    %80 = arith.addf %77, %79 : vector<8x128xf32>
    %81 = vector.broadcast %6 : f32 to vector<8x128xf32>
    %82 = arith.mulf %57, %81 : vector<8x128xf32>
    %83 = arith.addf %80, %82 : vector<8x128xf32>
    %84 = vector.broadcast %7 : f32 to vector<8x128xf32>
    %85 = arith.mulf %60, %84 : vector<8x128xf32>
    %86 = arith.addf %83, %85 : vector<8x128xf32>
    %87 = vector.broadcast %17 : f32 to vector<8x128xf32>
    %88 = arith.addf %86, %87 : vector<8x128xf32>
    %cst_8 = arith.constant 0.000000e+00 : f32
    %89 = vector.broadcast %cst_8 : f32 to vector<8x128xf32>
    %90 = arith.maximumf %88, %89 : vector<8x128xf32>
    %91 = vector.broadcast %8 : f32 to vector<8x128xf32>
    %92 = arith.mulf %51, %91 : vector<8x128xf32>
    %93 = vector.broadcast %9 : f32 to vector<8x128xf32>
    %94 = arith.mulf %54, %93 : vector<8x128xf32>
    %95 = arith.addf %92, %94 : vector<8x128xf32>
    %96 = vector.broadcast %10 : f32 to vector<8x128xf32>
    %97 = arith.mulf %57, %96 : vector<8x128xf32>
    %98 = arith.addf %95, %97 : vector<8x128xf32>
    %99 = vector.broadcast %11 : f32 to vector<8x128xf32>
    %100 = arith.mulf %60, %99 : vector<8x128xf32>
    %101 = arith.addf %98, %100 : vector<8x128xf32>
    %102 = vector.broadcast %18 : f32 to vector<8x128xf32>
    %103 = arith.addf %101, %102 : vector<8x128xf32>
    %cst_9 = arith.constant 0.000000e+00 : f32
    %104 = vector.broadcast %cst_9 : f32 to vector<8x128xf32>
    %105 = arith.maximumf %103, %104 : vector<8x128xf32>
    %106 = vector.broadcast %12 : f32 to vector<8x128xf32>
    %107 = arith.mulf %51, %106 : vector<8x128xf32>
    %108 = vector.broadcast %13 : f32 to vector<8x128xf32>
    %109 = arith.mulf %54, %108 : vector<8x128xf32>
    %110 = arith.addf %107, %109 : vector<8x128xf32>
    %111 = vector.broadcast %14 : f32 to vector<8x128xf32>
    %112 = arith.mulf %57, %111 : vector<8x128xf32>
    %113 = arith.addf %110, %112 : vector<8x128xf32>
    %114 = vector.broadcast %15 : f32 to vector<8x128xf32>
    %115 = arith.mulf %60, %114 : vector<8x128xf32>
    %116 = arith.addf %113, %115 : vector<8x128xf32>
    %117 = vector.broadcast %19 : f32 to vector<8x128xf32>
    %118 = arith.addf %116, %117 : vector<8x128xf32>
    %cst_10 = arith.constant 0.000000e+00 : f32
    %119 = vector.broadcast %cst_10 : f32 to vector<8x128xf32>
    %120 = arith.maximumf %118, %119 : vector<8x128xf32>
    %121 = vector.broadcast %20 : f32 to vector<8x128xf32>
    %122 = arith.mulf %75, %121 : vector<8x128xf32>
    %123 = vector.broadcast %21 : f32 to vector<8x128xf32>
    %124 = arith.mulf %90, %123 : vector<8x128xf32>
    %125 = arith.addf %122, %124 : vector<8x128xf32>
    %126 = vector.broadcast %22 : f32 to vector<8x128xf32>
    %127 = arith.mulf %105, %126 : vector<8x128xf32>
    %128 = arith.addf %125, %127 : vector<8x128xf32>
    %129 = vector.broadcast %23 : f32 to vector<8x128xf32>
    %130 = arith.mulf %120, %129 : vector<8x128xf32>
    %131 = arith.addf %128, %130 : vector<8x128xf32>
    %132 = vector.broadcast %32 : f32 to vector<8x128xf32>
    %133 = arith.addf %131, %132 : vector<8x128xf32>
    %cst_11 = arith.constant 0.000000e+00 : f32
    %134 = vector.broadcast %cst_11 : f32 to vector<8x128xf32>
    %135 = arith.maximumf %133, %134 : vector<8x128xf32>
    %136 = vector.broadcast %24 : f32 to vector<8x128xf32>
    %137 = arith.mulf %75, %136 : vector<8x128xf32>
    %138 = vector.broadcast %25 : f32 to vector<8x128xf32>
    %139 = arith.mulf %90, %138 : vector<8x128xf32>
    %140 = arith.addf %137, %139 : vector<8x128xf32>
    %141 = vector.broadcast %26 : f32 to vector<8x128xf32>
    %142 = arith.mulf %105, %141 : vector<8x128xf32>
    %143 = arith.addf %140, %142 : vector<8x128xf32>
    %144 = vector.broadcast %27 : f32 to vector<8x128xf32>
    %145 = arith.mulf %120, %144 : vector<8x128xf32>
    %146 = arith.addf %143, %145 : vector<8x128xf32>
    %147 = vector.broadcast %33 : f32 to vector<8x128xf32>
    %148 = arith.addf %146, %147 : vector<8x128xf32>
    %cst_12 = arith.constant 0.000000e+00 : f32
    %149 = vector.broadcast %cst_12 : f32 to vector<8x128xf32>
    %150 = arith.maximumf %148, %149 : vector<8x128xf32>
    %151 = vector.broadcast %28 : f32 to vector<8x128xf32>
    %152 = arith.mulf %75, %151 : vector<8x128xf32>
    %153 = vector.broadcast %29 : f32 to vector<8x128xf32>
    %154 = arith.mulf %90, %153 : vector<8x128xf32>
    %155 = arith.addf %152, %154 : vector<8x128xf32>
    %156 = vector.broadcast %30 : f32 to vector<8x128xf32>
    %157 = arith.mulf %105, %156 : vector<8x128xf32>
    %158 = arith.addf %155, %157 : vector<8x128xf32>
    %159 = vector.broadcast %31 : f32 to vector<8x128xf32>
    %160 = arith.mulf %120, %159 : vector<8x128xf32>
    %161 = arith.addf %158, %160 : vector<8x128xf32>
    %162 = vector.broadcast %34 : f32 to vector<8x128xf32>
    %163 = arith.addf %161, %162 : vector<8x128xf32>
    %cst_13 = arith.constant 0.000000e+00 : f32
    %164 = vector.broadcast %cst_13 : f32 to vector<8x128xf32>
    %165 = arith.maximumf %163, %164 : vector<8x128xf32>
    %166 = vector.broadcast %35 : f32 to vector<8x128xf32>
    %167 = arith.mulf %135, %166 : vector<8x128xf32>
    %168 = vector.broadcast %36 : f32 to vector<8x128xf32>
    %169 = arith.mulf %150, %168 : vector<8x128xf32>
    %170 = arith.addf %167, %169 : vector<8x128xf32>
    %171 = vector.broadcast %37 : f32 to vector<8x128xf32>
    %172 = arith.mulf %165, %171 : vector<8x128xf32>
    %173 = arith.addf %170, %172 : vector<8x128xf32>
    %174 = vector.broadcast %44 : f32 to vector<8x128xf32>
    %175 = arith.addf %173, %174 : vector<8x128xf32>
    %c0_14 = arith.constant 0 : index
    %176 = arith.index_cast %48 : i32 to index
    %c0_15 = arith.constant 0 : index
    %177 = vector.load %arg3[%c0_14, %176, %c0_15] : memref<3x8x128xf32, #tpu.memory_space<vmem>>, vector<1x8x128xf32>
    %178 = vector.shape_cast %177 : vector<1x8x128xf32> to vector<8x128xf32>
    %179 = vector.shape_cast %175 : vector<8x128xf32> to vector<1x8x128xf32>
    tpu.vector_store %arg3[%c0_14, %176, %c0_15], %179 {strides = array<i32>} : memref<3x8x128xf32, #tpu.memory_space<vmem>>, vector<1x8x128xf32>,
    %180 = vector.broadcast %38 : f32 to vector<8x128xf32>
    %181 = arith.mulf %135, %180 : vector<8x128xf32>
    %182 = vector.broadcast %39 : f32 to vector<8x128xf32>
    %183 = arith.mulf %150, %182 : vector<8x128xf32>
    %184 = arith.addf %181, %183 : vector<8x128xf32>
    %185 = vector.broadcast %40 : f32 to vector<8x128xf32>
    %186 = arith.mulf %165, %185 : vector<8x128xf32>
    %187 = arith.addf %184, %186 : vector<8x128xf32>
    %188 = vector.broadcast %45 : f32 to vector<8x128xf32>
    %189 = arith.addf %187, %188 : vector<8x128xf32>
    %c1_16 = arith.constant 1 : index
    %190 = arith.index_cast %48 : i32 to index
    %c0_17 = arith.constant 0 : index
    %191 = vector.load %arg3[%c1_16, %190, %c0_17] : memref<3x8x128xf32, #tpu.memory_space<vmem>>, vector<1x8x128xf32>
    %192 = vector.shape_cast %191 : vector<1x8x128xf32> to vector<8x128xf32>
    %193 = vector.shape_cast %189 : vector<8x128xf32> to vector<1x8x128xf32>
    tpu.vector_store %arg3[%c1_16, %190, %c0_17], %193 {strides = array<i32>} : memref<3x8x128xf32, #tpu.memory_space<vmem>>, vector<1x8x128xf32>,
    %194 = vector.broadcast %41 : f32 to vector<8x128xf32>
    %195 = arith.mulf %135, %194 : vector<8x128xf32>
    %196 = vector.broadcast %42 : f32 to vector<8x128xf32>
    %197 = arith.mulf %150, %196 : vector<8x128xf32>
    %198 = arith.addf %195, %197 : vector<8x128xf32>
    %199 = vector.broadcast %43 : f32 to vector<8x128xf32>
    %200 = arith.mulf %165, %199 : vector<8x128xf32>
    %201 = arith.addf %198, %200 : vector<8x128xf32>
    %202 = vector.broadcast %46 : f32 to vector<8x128xf32>
    %203 = arith.addf %201, %202 : vector<8x128xf32>
    %c2_18 = arith.constant 2 : index
    %204 = arith.index_cast %48 : i32 to index
    %c0_19 = arith.constant 0 : index
    %205 = vector.load %arg3[%c2_18, %204, %c0_19] : memref<3x8x128xf32, #tpu.memory_space<vmem>>, vector<1x8x128xf32>
    %206 = vector.shape_cast %205 : vector<1x8x128xf32> to vector<8x128xf32>
    %207 = vector.shape_cast %203 : vector<8x128xf32> to vector<1x8x128xf32>
    tpu.vector_store %arg3[%c2_18, %204, %c0_19], %207 {strides = array<i32>} : memref<3x8x128xf32, #tpu.memory_space<vmem>>, vector<1x8x128xf32>,
    %c1_i32 = arith.constant 1 : i32
    return
  }
  func.func @transform_0(%arg0: i32) -> i32 {
    %c0_i32 = arith.constant 0 : i32
    %c0_i32_0 = arith.constant 0 : i32
    return %c0_i32 : i32
  }
  func.func @transform_1(%arg0: i32) -> (i32, i32, i32) {
    %c0_i32 = arith.constant 0 : i32
    %c0_i32_0 = arith.constant 0 : i32
    %c0_i32_1 = arith.constant 0 : i32
    return %c0_i32, %arg0, %c0_i32_0 : i32, i32, i32
  }
  func.func @transform_2(%arg0: i32) -> (i32, i32, i32) {
    %c0_i32 = arith.constant 0 : i32
    %c0_i32_0 = arith.constant 0 : i32
    %c0_i32_1 = arith.constant 0 : i32
    return %c0_i32, %arg0, %c0_i32_0 : i32, i32, i32
  }
}

</mosaic_0001>

<llo_original>
// kernel: deathstar_forward.1
$region0: #{deathstar_forward.1}
  #allocation0 [shape = 'u32[]', space=smem, size = 0x4, offset = 0x4, fixed_abs, tag = 'smem constant byte address 0x4 - core index']
  #allocation1 [shape = 'u32[72,128]{1,0:T(1,128)}', space=vmem, size = 0x9000, scoped, tag = 'internal scratch']
  %s0 = inlined_call_operand.vmem [shape: f32[47], index: 0, kind: input, shape index: {}]
  %s1 = inlined_call_operand.vmem [shape: f32[4,8,128], index: 1, kind: input, shape index: {}]
  %s2 = inlined_call_operand.vmem [shape: f32[3,8,128], index: 2, kind: output, shape index: {}]
  %s3 = sld [smem:[#allocation0]]
  $region22: #{deathstar_forward.1} parent=0
    _
  %s5 = ssub.s32 1, %s3
  %s6 = scalar_select 0, %s5, %s3
  $region1: #{deathstar_forward.1} parent=0
    #allocation2 [shape = 'u8[512]{0}', space=smem, size = 0x200, scoped, tag = 'input window, operand 0, single buffered']
    #allocation3 [shape = 's32[1]{0}', space=sflag, size = 0x4, scoped, tag = 'scoped memory for deathstar_forward.1']
    %7 = vsyncpa [#allocation3], 0
    // Predicated region
    $region2: #{deathstar_forward.1} parent=1 // pred_check
      _
    $region3: #{deathstar_forward.1} parent=1 // pred_check_branch
      %9 = sbr.rel (0) target = $region5
    $region4: #{deathstar_forward.1} parent=1 // pred_region
      %11 = vsyncadd [#allocation3], 0
      %s13 = sshll.u32 %s0, 4
      %s14 = int_to_ptr.vmem [resolvable:$true] %s13
      %16 = dma.vmem_to_smem %s14, 16, [#allocation2], [#allocation3]
    $region5: #{deathstar_forward.1} parent=1 // pred_fallthru
      _
    // Predicated region
    $region6: #{deathstar_forward.1} parent=1 // pred_check
      _
    $region7: #{deathstar_forward.1} parent=1 // pred_check_branch
      %18 = sbr.rel (0) target = $region9
    $region8: #{deathstar_forward.1} parent=1 // pred_region
      _
    $region9: #{deathstar_forward.1} parent=1 // pred_fallthru
      _
    // Predicated region
    $region10: #{deathstar_forward.1} parent=1 // pred_check
      _
    $region11: #{deathstar_forward.1} parent=1 // pred_check_branch
      %20 = sbr.rel (0) target = $region13
    $region12: #{deathstar_forward.1} parent=1 // pred_region
      %22 = dma.done [#allocation3], 16
    $region13: #{deathstar_forward.1} parent=1 // pred_fallthru
      _
    %23 = sfence
    %s24 = sld [smem:[#allocation2]]
    %s25 = sld [smem:[#allocation2 + $0x1]]
    %s26 = sld [smem:[#allocation2 + $0x2]]
    %s27 = sld [smem:[#allocation2 + $0x3]]
    %s28 = sld [smem:[#allocation2 + $0x4]]
    %s29 = sld [smem:[#allocation2 + $0x5]]
    %s30 = sld [smem:[#allocation2 + $0x6]]
    %s31 = sld [smem:[#allocation2 + $0x7]]
    %s32 = sld [smem:[#allocation2 + $0x8]]
    %s33 = sld [smem:[#allocation2 + $0x9]]
    %s34 = sld [smem:[#allocation2 + $0xa]]
    %s35 = sld [smem:[#allocation2 + $0xb]]
    %s36 = sld [smem:[#allocation2 + $0xc]]
    %s37 = sld [smem:[#allocation2 + $0xd]]
    %s38 = sld [smem:[#allocation2 + $0xe]]
    %s39 = sld [smem:[#allocation2 + $0xf]]
    %s40 = sld [smem:[#allocation2 + $0x10]]
    %s41 = sld [smem:[#allocation2 + $0x11]]
    %s42 = sld [smem:[#allocation2 + $0x12]]
    %s43 = sld [smem:[#allocation2 + $0x13]]
    %s44 = sld [smem:[#allocation2 + $0x14]]
    %s45 = sld [smem:[#allocation2 + $0x15]]
    %s46 = sld [smem:[#allocation2 + $0x16]]
    %s47 = sld [smem:[#allocation2 + $0x17]]
    %s48 = sld [smem:[#allocation2 + $0x18]]
    %s49 = sld [smem:[#allocation2 + $0x19]]
    %s50 = sld [smem:[#allocation2 + $0x1a]]
    %s51 = sld [smem:[#allocation2 + $0x1b]]
    %s52 = sld [smem:[#allocation2 + $0x1c]]
    %s53 = sld [smem:[#allocation2 + $0x1d]]
    %s54 = sld [smem:[#allocation2 + $0x1e]]
    %s55 = sld [smem:[#allocation2 + $0x1f]]
    %s56 = sld [smem:[#allocation2 + $0x20]]
    %s57 = sld [smem:[#allocation2 + $0x21]]
    %s58 = sld [smem:[#allocation2 + $0x22]]
    %s59 = sld [smem:[#allocation2 + $0x23]]
    %s60 = sld [smem:[#allocation2 + $0x24]]
    %s61 = sld [smem:[#allocation2 + $0x25]]
    %s62 = sld [smem:[#allocation2 + $0x26]]
    %s63 = sld [smem:[#allocation2 + $0x27]]
    %s64 = sld [smem:[#allocation2 + $0x28]]
    %s65 = sld [smem:[#allocation2 + $0x29]]
    %s66 = sld [smem:[#allocation2 + $0x2a]]
    %s67 = sld [smem:[#allocation2 + $0x2b]]
    %s68 = sld [smem:[#allocation2 + $0x2c]]
    %s69 = sld [smem:[#allocation2 + $0x2d]]
    %s70 = sld [smem:[#allocation2 + $0x2e]]
    %v71 = vld [vmem:[%s1] sm:$0xff]
    %s72 = sadd.s32 0, 8
    %s73 = scalar_lea.vmem %s1, %s72
    %v74 = vld [vmem:[%s73] sm:$0xff]
    %s75 = sadd.s32 0, 16
    %s76 = scalar_lea.vmem %s1, %s75
    %v77 = vld [vmem:[%s76] sm:$0xff]
    %s78 = sadd.s32 0, 24
    %s79 = scalar_lea.vmem %s1, %s78
    %v80 = vld [vmem:[%s79] sm:$0xff]
    %v81 = vstv %s24
    %v82 = vmul.f32 %v71, %v81
    %v83 = vstv %s25
    %v84 = vmul.f32 %v74, %v83
    %v85 = vadd.f32 %v82, %v84
    %v86 = vstv %s26
    %v87 = vmul.f32 %v77, %v86
    %v88 = vadd.f32 %v85, %v87
    %v89 = vstv %s27
    %v90 = vmul.f32 %v80, %v89
    %v91 = vadd.f32 %v88, %v90
    %v92 = vstv %s40
    %v93 = vadd.f32 %v91, %v92
    %v94 = vmax.f32 %v93, 0.0
    %v95 = vstv %s28
    %v96 = vmul.f32 %v71, %v95
    %v97 = vstv %s29
    %v98 = vmul.f32 %v74, %v97
    %v99 = vadd.f32 %v96, %v98
    %v100 = vstv %s30
    %v101 = vmul.f32 %v77, %v100
    %v102 = vadd.f32 %v99, %v101
    %v103 = vstv %s31
    %v104 = vmul.f32 %v80, %v103
    %v105 = vadd.f32 %v102, %v104
    %v106 = vstv %s41
    %v107 = vadd.f32 %v105, %v106
    %v108 = vmax.f32 %v107, 0.0
    %v109 = vstv %s32
    %v110 = vmul.f32 %v71, %v109
    %v111 = vstv %s33
    %v112 = vmul.f32 %v74, %v111
    %v113 = vadd.f32 %v110, %v112
    %v114 = vstv %s34
    %v115 = vmul.f32 %v77, %v114
    %v116 = vadd.f32 %v113, %v115
    %v117 = vstv %s35
    %v118 = vmul.f32 %v80, %v117
    %v119 = vadd.f32 %v116, %v118
    %v120 = vstv %s42
    %v121 = vadd.f32 %v119, %v120
    %v122 = vmax.f32 %v121, 0.0
    %v123 = vstv %s36
    %v124 = vmul.f32 %v71, %v123
    %v125 = vstv %s37
    %v126 = vmul.f32 %v74, %v125
    %v127 = vadd.f32 %v124, %v126
    %v128 = vstv %s38
    %v129 = vmul.f32 %v77, %v128
    %v130 = vadd.f32 %v127, %v129
    %v131 = vstv %s39
    %v132 = vmul.f32 %v80, %v131
    %v133 = vadd.f32 %v130, %v132
    %v134 = vstv %s43
    %v135 = vadd.f32 %v133, %v134
    %v136 = vmax.f32 %v135, 0.0
    %v137 = vstv %s44
    %v138 = vmul.f32 %v94, %v137
    %v139 = vstv %s45
    %v140 = vmul.f32 %v108, %v139
    %v141 = vadd.f32 %v138, %v140
    %v142 = vstv %s46
    %v143 = vmul.f32 %v122, %v142
    %v144 = vadd.f32 %v141, %v143
    %v145 = vstv %s47
    %v146 = vmul.f32 %v136, %v145
    %v147 = vadd.f32 %v144, %v146
    %v148 = vstv %s56
    %v149 = vadd.f32 %v147, %v148
    %v150 = vmax.f32 %v149, 0.0
    %v151 = vstv %s48
    %v152 = vmul.f32 %v94, %v151
    %v153 = vstv %s49
    %v154 = vmul.f32 %v108, %v153
    %v155 = vadd.f32 %v152, %v154
    %v156 = vstv %s50
    %v157 = vmul.f32 %v122, %v156
    %v158 = vadd.f32 %v155, %v157
    %v159 = vstv %s51
    %v160 = vmul.f32 %v136, %v159
    %v161 = vadd.f32 %v158, %v160
    %v162 = vstv %s57
    %v163 = vadd.f32 %v161, %v162
    %v164 = vmax.f32 %v163, 0.0
    %v165 = vstv %s52
    %v166 = vmul.f32 %v94, %v165
    %v167 = vstv %s53
    %v168 = vmul.f32 %v108, %v167
    %v169 = vadd.f32 %v166, %v168
    %v170 = vstv %s54
    %v171 = vmul.f32 %v122, %v170
    %v172 = vadd.f32 %v169, %v171
    %v173 = vstv %s55
    %v174 = vmul.f32 %v136, %v173
    %v175 = vadd.f32 %v172, %v174
    %v176 = vstv %s58
    %v177 = vadd.f32 %v175, %v176
    %v178 = vmax.f32 %v177, 0.0
    %v179 = vstv %s59
    %v180 = vmul.f32 %v150, %v179
    %v181 = vstv %s60
    %v182 = vmul.f32 %v164, %v181
    %v183 = vadd.f32 %v180, %v182
    %v184 = vstv %s61
    %v185 = vmul.f32 %v178, %v184
    %v186 = vadd.f32 %v183, %v185
    %v187 = vstv %s68
    %v188 = vadd.f32 %v186, %v187
    %189 = vst [vmem:[%s2] sm:$0xff] %v188
    %v190 = vstv %s62
    %v191 = vmul.f32 %v150, %v190
    %v192 = vstv %s63
    %v193 = vmul.f32 %v164, %v192
    %v194 = vadd.f32 %v191, %v193
    %v195 = vstv %s64
    %v196 = vmul.f32 %v178, %v195
    %v197 = vadd.f32 %v194, %v196
    %v198 = vstv %s69
    %v199 = vadd.f32 %v197, %v198
    %s200 = scalar_lea.vmem %s2, %s72
    %201 = vst [vmem:[%s200] sm:$0xff] %v199
    %v202 = vstv %s65
    %v203 = vmul.f32 %v150, %v202
    %v204 = vstv %s66
    %v205 = vmul.f32 %v164, %v204
    %v206 = vadd.f32 %v203, %v205
    %v207 = vstv %s67
    %v208 = vmul.f32 %v178, %v207
    %v209 = vadd.f32 %v206, %v208
    %v210 = vstv %s70
    %v211 = vadd.f32 %v209, %v210
    %s212 = scalar_lea.vmem %s2, %s75
    %213 = vst [vmem:[%s212] sm:$0xff] %v211
    // Predicated region
    $region14: #{deathstar_forward.1} parent=1 // pred_check
      _
    $region15: #{deathstar_forward.1} parent=1 // pred_check_branch
      %215 = sbr.rel (0) target = $region17
    $region16: #{deathstar_forward.1} parent=1 // pred_region
      _
    $region17: #{deathstar_forward.1} parent=1 // pred_fallthru
      _
    // Predicated region
    $region18: #{deathstar_forward.1} parent=1 // pred_check
      _
    $region19: #{deathstar_forward.1} parent=1 // pred_check_branch
      %217 = sbr.rel (0) target = $region21
    $region20: #{deathstar_forward.1} parent=1 // pred_region
      _
    $region21: #{deathstar_forward.1} parent=1 // pred_fallthru
      _
    %218 = vsyncpa [#allocation3], 1

</llo_original>
